<compile_context>
chip_gen: v7x
topology: tpu7x:2x2x1
jax: 0.10.0
libtpu: 0.0.40
codegen_flags: <defaults>
</compile_context>

<pallas_src>
import functools

import jax
import jax.numpy as jnp
from jax.experimental import pallas as pl
from jax.experimental.pallas import tpu as pltpu

_LANE = 128
_SUBLANE = 8
_MAX_BLOCK_BYTES = 2 * 1024 * 1024      # per-tile cap (f32 working set), v5e-safe
_SMALL_BYTES = 4 * 1024 * 1024          # fast-path input-size budget
_VMEM_LIMIT = 32 * 1024 * 1024          # safe scoped-VMEM request on v5e/v6e/v7x


def _round_up(a, b):
    return -(-a // b) * b


# ---------------------------------------------------------------------------
# Small-input fast path: whole tensor resident in VMEM, fused mean + subtract.
# ---------------------------------------------------------------------------
def _fused_center_kernel(x_ref, o_ref, *, inv_n):
    x = x_ref[...].astype(jnp.float32)
    mean = jnp.sum(x) * inv_n                   # 1/N is a trace-time constant
    o_ref[...] = (x - mean).astype(o_ref.dtype)


# ---------------------------------------------------------------------------
# Phase 1 (streaming): per-core (8, cols) f32 partial sums; "arbitrary" axis is
# the row-block reduction, leading "parallel" axis of size 2 for v7x megacore.
# ---------------------------------------------------------------------------
def _partial_sum_kernel(x_ref, acc_ref, *, rows_total, tile_r, blocks_per_core,
                        need_mask):
    c = pl.program_id(0)
    i = pl.program_id(1)

    @pl.when(i == 0)
    def _():
        acc_ref[...] = jnp.zeros_like(acc_ref)

    x = x_ref[...].astype(jnp.float32)          # f32 accumulation (bf16-safe)
    if need_mask:
        lb = c * blocks_per_core + i            # logical row-block id
        rid = lb * tile_r + jax.lax.broadcasted_iota(jnp.int32, x.shape, 0)
        x = jnp.where(rid < rows_total, x, 0.0)
    tr, cl = x.shape
    # Keep all 8 sublanes busy: per-sublane partials, no cross-sublane reduce here.
    acc_ref[...] += jnp.sum(x.reshape(tr // _SUBLANE, _SUBLANE, cl), axis=0)


# ---------------------------------------------------------------------------
# Phase 2: lane-dense elementwise subtract of the scalar mean (SMEM).
# ---------------------------------------------------------------------------
def _subtract_kernel(mean_ref, x_ref, o_ref):
    mean = mean_ref[0, 0]                       # f32 scalar from SMEM
    o_ref[...] = (x_ref[...].astype(jnp.float32) - mean).astype(o_ref.dtype)


def _choose_cols(n):
    """Widest lane-aligned column count that divides n exactly (no pad needed)."""
    for c in (2048, 1024, 512, 256, 128):
        if n % c == 0:
            return c
    return None


def _small_2d_shape(n):
    """Lane-dense 2-D view for the fast path (prefer >= 8 rows, wide cols)."""
    best = None
    for c in (1024, 512, 256, 128):
        if n % c == 0:
            if best is None:
                best = c
            if n // c >= _SUBLANE:
                return (n // c, c)
    if best is not None:
        return (n // best, best)
    return (1, n)


@functools.partial(jax.jit, static_argnames=("force_two_phase",))
def centered_layer(x, force_two_phase=False):
    """x: any-shape float array -> x - x.mean() (global scalar mean)."""
    orig_shape = x.shape
    dtype = x.dtype
    n = x.size
    inv_n = 1.0 / float(n)                      # trace-time constant
    itemsize = jnp.dtype(dtype).itemsize

    flat = x.reshape(-1)

    # ---------------- small-input fast path (1 read + 1 write) ----------------
    rs, cs = _small_2d_shape(n)
    fp = _round_up(rs, _SUBLANE) * _round_up(cs, _LANE) * 4   # padded f32 footprint
    if (not force_two_phase) and 3 * fp <= 12 * 1024 * 1024 \
            and n * itemsize <= _SMALL_BYTES:
        x2d = flat.reshape(rs, cs)
        out2d = pl.pallas_call(
            functools.partial(_fused_center_kernel, inv_n=inv_n),
            out_shape=jax.ShapeDtypeStruct((rs, cs), dtype),
            compiler_params=pltpu.CompilerParams(vmem_limit_bytes=_VMEM_LIMIT),
        )(x2d)
        return out2d.reshape(orig_shape)

    # ---------------------- streaming two-phase path --------------------------
    cols = _choose_cols(n)
    pad = 0
    if cols is None:
        # Rare fully-ragged case (n not a multiple of 128): accept pad + slice.
        # TODO(synk): handle the ragged tail with a separate tiny XLA op instead
        # of padding x and slicing the output (saves up to 4N bytes of traffic).
        cols = 512
        rows_total = -(-n // cols)
        pad = rows_total * cols - n
        flat = jnp.pad(flat, (0, pad))          # zeros: do not perturb the sum
    else:
        rows_total = n // cols

    # Full-width tiles up to _MAX_BLOCK_BYTES (f32 working set), but keep >= ~8
    # grid steps (>= 4 per core on v7x) so pipelining / megacore sharding work.
    max_tile_r = max(_SUBLANE,
                     (_MAX_BLOCK_BYTES // (cols * 4)) // _SUBLANE * _SUBLANE)
    want_tile_r = max(_SUBLANE, _round_up(-(-rows_total // 8), _SUBLANE))
    tile_r = min(max_tile_r, want_tile_r)
    tile_r = min(tile_r, _round_up(rows_total, _SUBLANE))
    grid_r = -(-rows_total // tile_r)
    blocks_per_core = -(-grid_r // 2)
    need_mask = (2 * blocks_per_core * tile_r != rows_total)
    last_block = grid_r - 1

    x2d = flat.reshape(rows_total, cols)

    # Phase 1: per-core (8, cols) f32 partial sums (2 cores in parallel on v7x).
    col_sums = pl.pallas_call(
        functools.partial(_partial_sum_kernel, rows_total=rows_total,
                          tile_r=tile_r, blocks_per_core=blocks_per_core,
                          need_mask=need_mask),
        out_shape=jax.ShapeDtypeStruct((2 * _SUBLANE, cols), jnp.float32),
        grid=(2, blocks_per_core),
        in_specs=[pl.BlockSpec(
            (tile_r, cols),
            lambda c, i: (jnp.minimum(c * blocks_per_core + i, last_block), 0))],
        out_specs=pl.BlockSpec((_SUBLANE, cols), lambda c, i: (c, 0)),
        compiler_params=pltpu.CompilerParams(
            dimension_semantics=("parallel", "arbitrary"),
            vmem_limit_bytes=_VMEM_LIMIT),
    )(x2d)

    # Tiny finalize: reduce (16, cols) partials and scale by the trace-time 1/N.
    mean2d = (jnp.sum(col_sums) * inv_n).astype(jnp.float32).reshape(1, 1)

    # Phase 2: tiled, pipelined, lane-dense subtract ("parallel" -> both TCs).
    out2d = pl.pallas_call(
        _subtract_kernel,
        out_shape=jax.ShapeDtypeStruct((rows_total, cols), dtype),
        grid=(grid_r,),
        in_specs=[
            pl.BlockSpec(memory_space=pltpu.MemorySpace.SMEM),   # scalar mean
            pl.BlockSpec((tile_r, cols), lambda i: (i, 0)),      # x tile
        ],
        out_specs=pl.BlockSpec((tile_r, cols), lambda i: (i, 0)),
        compiler_params=pltpu.CompilerParams(
            dimension_semantics=("parallel",),
            vmem_limit_bytes=_VMEM_LIMIT),
    )(mean2d, x2d)

    out_flat = out2d.reshape(-1)
    if pad:
        out_flat = out_flat[:n]
    return out_flat.reshape(orig_shape)


if __name__ == "__main__":
    key = jax.random.PRNGKey(0)

    # Small 4-D tensor (batch=2, channels=4, 16x16 spatial) -> VMEM fast path.
    x = jax.random.normal(key, (2, 4, 16, 16), dtype=jnp.float32)
    out = centered_layer(x)
    jax.block_until_ready(out)
    ref = x - jnp.mean(x)
    assert out.shape == x.shape and out.dtype == x.dtype
    assert jnp.allclose(out, ref, atol=1e-5, rtol=1e-5)
    assert abs(float(jnp.mean(out))) < 1e-5

    # Exercise the streaming two-phase path (aligned shape, no tail masking).
    x_mid = jax.random.normal(jax.random.PRNGKey(1), (4, 8, 64, 64),
                              dtype=jnp.float32)
    out_mid = centered_layer(x_mid, force_two_phase=True)
    jax.block_until_ready(out_mid)
    ref_mid = x_mid - jnp.mean(x_mid)
    assert jnp.allclose(out_mid, ref_mid, atol=1e-5, rtol=1e-5)

    # Exercise the ragged / in-kernel masked-tail path.
    x_rag = jax.random.normal(jax.random.PRNGKey(2), (5000,), dtype=jnp.float32)
    out_rag = centered_layer(x_rag, force_two_phase=True)
    jax.block_until_ready(out_rag)
    ref_rag = x_rag - jnp.mean(x_rag)
    assert out_rag.shape == x_rag.shape
    assert jnp.allclose(out_rag, ref_rag, atol=1e-5, rtol=1e-5)

    print("KERNEL_OK")
</pallas_src>

<mosaic_0001>
module attributes {stable_mosaic.version = 11 : i64} {
  func.func @_fused_center_kernel(%arg0: memref<8x256xf32, #tpu.memory_space<vmem>>, %arg1: memref<8x256xf32, #tpu.memory_space<vmem>>) attributes {dimension_semantics = [], scalar_prefetch = 0 : i64, scratch_operands = 0 : i64, tpu.core_type = #tpu.core_type<tc>} {
    %c0 = arith.constant 0 : index
    %c0_0 = arith.constant 0 : index
    %0 = vector.load %arg0[%c0, %c0_0] : memref<8x256xf32, #tpu.memory_space<vmem>>, vector<8x256xf32>
    %1 = vector.shape_cast %0 : vector<8x256xf32> to vector<1x8x256xf32>
    %cst = arith.constant dense<0.000000e+00> : vector<1xf32>
    %2 = vector.multi_reduction <add>, %1, %cst [1, 2] : vector<1x8x256xf32> to vector<1xf32>
    %3 = vector.shape_cast %2 : vector<1xf32> to vector<1x1x1xf32>
    %4 = vector.extract %3[0, 0, 0] : f32 from vector<1x1x1xf32>
    %cst_1 = arith.constant 4.8828125E-4 : f32
    %5 = arith.mulf %4, %cst_1 : f32
    %6 = vector.broadcast %5 : f32 to vector<8x256xf32>
    %7 = arith.subf %0, %6 : vector<8x256xf32>
    %c0_2 = arith.constant 0 : index
    %c0_3 = arith.constant 0 : index
    %8 = vector.load %arg1[%c0_2, %c0_3] : memref<8x256xf32, #tpu.memory_space<vmem>>, vector<8x256xf32>
    tpu.vector_store %arg1[%c0_2, %c0_3], %7 {strides = array<i32>} : memref<8x256xf32, #tpu.memory_space<vmem>>, vector<8x256xf32>,
    return
  }
}

</mosaic_0001>

<llo_original>
// kernel: centered_layer.1
$region0: #{centered_layer.1}
  #allocation0 [shape = 'u32[]', space=smem, size = 0x4, offset = 0x4, fixed_abs, tag = 'smem constant byte address 0x4 - core index']
  #allocation1 [shape = 'u32[144,128]{1,0:T(1,128)}', space=vmem, size = 0x12000, scoped, tag = 'internal scratch']
  %s0 = inlined_call_operand.vmem [shape: f32[8,256], index: 0, kind: input, shape index: {}]
  %s1 = inlined_call_operand.vmem [shape: f32[8,256], index: 1, kind: output, shape index: {}]
  %s2 = sld [smem:[#allocation0]]
  $region14: #{centered_layer.1} parent=0
    _
  %s4 = ssub.s32 1, %s2
  %s5 = scalar_select 0, %s4, %s2
  // Predicated region
  $region2: #{centered_layer.1} parent=0 // pred_check
    _
  $region3: #{centered_layer.1} parent=0 // pred_check_branch
    %7 = sbr.rel (0) target = $region5
  $region4: #{centered_layer.1} parent=0 // pred_region
    _
  $region5: #{centered_layer.1} parent=0 // pred_fallthru
    _
  %v8 = vld [vmem:[%s0] sm:$0xff]
  %v9 = vld [vmem:[%s0 + $0x8] sm:$0xff]
  %v10 = vadd.f32 %v8, %v9
  %11 = vadd.xlane.f32.xlu0 %v10
  %v12 = vpop.xlane.xlu0 %11
  %v13 = vrot.slane %v12, 4
  %v14 = vadd.f32 %v12, %v13
  %v15 = vrot.slane %v14, 2
  %v16 = vadd.f32 %v14, %v15
  %v17 = vrot.slane %v16, 1
  %v18 = vadd.f32 %v16, %v17
  %s19 = vtos %v18
  %s20 = smul.f32 %s19, 0.00048828125
  %v21 = vstv %s20
  %v22 = vsub.f32 %v8, %v21
  %v23 = vsub.f32 %v9, %v21
  %24 = vst [vmem:[%s1] sm:$0xff] %v22
  %25 = vst [vmem:[%s1 + $0x8] sm:$0xff] %v23
  // Predicated region
  $region6: #{centered_layer.1} parent=0 // pred_check
    _
  $region7: #{centered_layer.1} parent=0 // pred_check_branch
    %27 = sbr.rel (0) target = $region9
  $region8: #{centered_layer.1} parent=0 // pred_region
    _
  $region9: #{centered_layer.1} parent=0 // pred_fallthru
    _
  // Predicated region
  $region10: #{centered_layer.1} parent=0 // pred_check
    _
  $region11: #{centered_layer.1} parent=0 // pred_check_branch
    %29 = sbr.rel (0) target = $region13
  $region12: #{centered_layer.1} parent=0 // pred_region
    _
  $region13: #{centered_layer.1} parent=0 // pred_fallthru
    _

</llo_original>
